<compile_context>
chip_gen: v6e
topology: v6e:2x2x1
jax: 0.10.0
libtpu: 0.0.40
codegen_flags: <defaults>
</compile_context>

<pallas_src>
import jax
import jax.numpy as jnp
from jax.experimental import pallas as pl
from jax.experimental.pallas import tpu as pltpu

_LANES = 128
_SUBLANES = 8
_VMEM_LIMIT_BYTES = 40 * 1024 * 1024      # below v7x's 64 MiB physical, headroom left
_STREAM_BUDGET_BYTES = 20 * 1024 * 1024   # total for all double-buffered blocks
_TARGET_BYTES_PER_STREAM = 4 * 1024 * 1024


# ----------------------------- kernel bodies ------------------------------- #

def _sigmoid_f32(x):
    # Single EUP transcendental (tanh) instead of exp + reciprocal.
    return 0.5 * (jnp.tanh(0.5 * x) + 1.0)


def _loss_block(x, t, w):
    s = _sigmoid_f32(x.astype(jnp.float32))
    d = s - t.astype(jnp.float32)
    dd = d * d
    if w is not None:
        dd = dd * w.astype(jnp.float32)
    return dd


def _partial_sum(dd, vpu_partial):
    if vpu_partial:
        # (tr,128) -> (tr//8, 8, 128) is layout-free; sum over axis 0 is pure
        # VPU vector adds (no XLU in the steady state).
        return dd.reshape(-1, _SUBLANES, _LANES).sum(axis=0)
    # Tiny single-block fallback (R < 8 rows): one cross-sublane reduce.
    return dd.sum(axis=0, keepdims=True)


def _make_sum_kernel(*, tile_rows, n_valid, need_mask, vpu_partial, weighted):
    def kernel(*refs):
        if weighted:
            x_ref, t_ref, w_ref, o_ref = refs
        else:
            x_ref, t_ref, o_ref = refs
            w_ref = None
        i = pl.program_id(0)
        dd = _loss_block(x_ref[...], t_ref[...],
                         None if w_ref is None else w_ref[...])
        if need_mask:
            last = pl.num_programs(0) - 1

            @pl.when(i != last)
            def _steady():
                o_ref[...] = _partial_sum(dd, vpu_partial)

            @pl.when(i == last)
            def _tail():
                # Only the last block can contain invalid elements (block-pad
                # rows and/or the flat-pad tail).  int32 flat index: < 2^31.
                row = jax.lax.broadcasted_iota(jnp.int32, dd.shape, 0)
                lane = jax.lax.broadcasted_iota(jnp.int32, dd.shape, 1)
                flat = (i * tile_rows + row) * _LANES + lane
                masked = jnp.where(flat < n_valid, dd, 0.0)   # select, not mul
                o_ref[...] = _partial_sum(masked, vpu_partial)
        else:
            o_ref[...] = _partial_sum(dd, vpu_partial)
    return kernel


def _make_none_kernel(*, weighted, out_dtype):
    def kernel(*refs):
        if weighted:
            x_ref, t_ref, w_ref, o_ref = refs
        else:
            x_ref, t_ref, o_ref = refs
            w_ref = None
        dd = _loss_block(x_ref[...], t_ref[...],
                         None if w_ref is None else w_ref[...])
        o_ref[...] = dd.astype(out_dtype)
    return kernel


# ----------------------------- wrapper ------------------------------------- #

def _choose_tile_rows(stream_itemsizes):
    """Rows per (128-lane) block, sized from actual operand itemsizes.

    Targets a few MiB per stream per grid step (amortizes ~0.35us step
    overhead against HBM bandwidth) while keeping all double-buffered stream
    blocks inside a conservative VMEM budget (v7x-safe).
    """
    max_isz = max(stream_itemsizes)
    sum_isz = sum(stream_itemsizes)
    min_isz = min(stream_itemsizes)
    target_rows = _TARGET_BYTES_PER_STREAM // (_LANES * max_isz)
    budget_rows = _STREAM_BUDGET_BYTES // (2 * _LANES * sum_isz)
    tr = min(target_rows, budget_rows)
    # Sublane packing: 8 rows for 32-bit, 16 for bf16/f16, 32 for 8-bit.
    row_align = max(_SUBLANES, 32 // min_isz)
    tr = max(row_align, (tr // row_align) * row_align)
    return tr, row_align


def mse_with_logits_loss(y_logit, y_target, weight=None, reduce='mean',
                         out_dtype=None, _tile_rows_override=None):
    """Pallas implementation of MseWithLogitsLoss.forward.

    y_logit, y_target: (batch_size, num_classes); weight optional, same shape.
    Inputs may be any float dtype (bf16 stays narrow in HBM; math is f32).
    out_dtype: dtype of the elementwise loss for reduce='none' (default f32).
    """
    if y_logit.shape != y_target.shape:
        raise ValueError("y_logit and y_target must have the same shape")
    if reduce not in ('mean', 'sum', 'none'):
        raise ValueError(f"unknown reduce: {reduce}")
    orig_shape = y_logit.shape
    n = int(y_logit.size)

    # Lane-dense (R, 128) view.  Padding (a real copy) is only emitted when
    # the flat size is not a multiple of 128; when num_classes % 128 == 0 the
    # reshape is layout-free.
    R = (n + _LANES - 1) // _LANES
    pad = R * _LANES - n

    def _to_blocked(a):
        flat = a.reshape(-1)
        if pad:
            flat = jnp.pad(flat, (0, pad))
        return flat.reshape(R, _LANES)

    operands = [y_logit, y_target]
    if weight is not None:
        if weight.shape != orig_shape:
            raise ValueError("weight must have the same shape as y_logit")
        operands.append(weight)

    o_dt = jnp.dtype(out_dtype) if out_dtype is not None else jnp.dtype(jnp.float32)
    stream_itemsizes = [jnp.dtype(a.dtype).itemsize for a in operands]
    if reduce == 'none':
        stream_itemsizes = stream_itemsizes + [o_dt.itemsize]

    tr, row_align = _choose_tile_rows(stream_itemsizes)
    if _tile_rows_override is not None:
        tr = max(row_align, (_tile_rows_override // row_align) * row_align)
    if R <= tr:
        tr = R  # whole array in one block (small input)
    num_blocks = (R + tr - 1) // tr
    grid = (num_blocks,)

    blocked = [_to_blocked(a) for a in operands]
    in_specs = [pl.BlockSpec((tr, _LANES), lambda i: (i, 0)) for _ in operands]
    weighted = weight is not None

    if reduce == 'none':
        out = pl.pallas_call(
            _make_none_kernel(weighted=weighted, out_dtype=o_dt),
            out_shape=jax.ShapeDtypeStruct((R, _LANES), o_dt),
            grid_spec=pltpu.PrefetchScalarGridSpec(
                num_scalar_prefetch=0,
                grid=grid,
                in_specs=in_specs,
                out_specs=pl.BlockSpec((tr, _LANES), lambda i: (i, 0)),
            ),
            compiler_params=pltpu.CompilerParams(
                dimension_semantics=("parallel",),
                vmem_limit_bytes=_VMEM_LIMIT_BYTES),
        )(*blocked)
        out = out.reshape(-1)
        if pad:
            out = out[:n]
        return out.reshape(orig_shape)

    # reduce in ('mean', 'sum'): per-block lane-dense partial sums, fully
    # parallel grid (megacore-shardable), tiny wrapper-side finish.
    need_mask = (pad != 0) or (R % tr != 0)
    vpu_partial = (tr % _SUBLANES == 0)
    pr = _SUBLANES if vpu_partial else 1

    kernel = _make_sum_kernel(tile_rows=tr, n_valid=n, need_mask=need_mask,
                              vpu_partial=vpu_partial, weighted=weighted)
    partials = pl.pallas_call(
        kernel,
        out_shape=jax.ShapeDtypeStruct((num_blocks * pr, _LANES), jnp.float32),
        grid_spec=pltpu.PrefetchScalarGridSpec(
            num_scalar_prefetch=0,
            grid=grid,
            in_specs=in_specs,
            out_specs=pl.BlockSpec((pr, _LANES), lambda i: (i, 0)),
        ),
        compiler_params=pltpu.CompilerParams(
            dimension_semantics=("parallel",),
            vmem_limit_bytes=_VMEM_LIMIT_BYTES),
    )(*blocked)

    total = jnp.sum(partials)
    if reduce == 'mean':
        return total / jnp.float32(n)
    return total


# ----------------------------- reference ----------------------------------- #

def _ref(y_logit, y_target, weight=None, reduce='mean'):
    s = jax.nn.sigmoid(y_logit.astype(jnp.float32))
    loss = (s - y_target.astype(jnp.float32)) ** 2
    if weight is not None:
        loss = loss * weight.astype(jnp.float32)
    if reduce == 'mean':
        return loss.mean()
    if reduce == 'sum':
        return loss.sum()
    return loss


if __name__ == "__main__":
    key = jax.random.PRNGKey(0)
    k1, k2, k3 = jax.random.split(key, 3)

    B, C = 8, 128  # (batch_size, num_classes)
    y_logit = jax.random.normal(k1, (B, C), dtype=jnp.float32)
    y_target = (jax.random.uniform(k2, (B, C)) > 0.5).astype(jnp.float32)
    weight = jax.random.uniform(k3, (B, C), dtype=jnp.float32)

    # default reduce='mean', no weight
    out_mean = mse_with_logits_loss(y_logit, y_target)
    jax.block_until_ready(out_mean)
    assert jnp.allclose(out_mean, _ref(y_logit, y_target), atol=1e-6, rtol=1e-5)

    # weighted sum
    out_sum = mse_with_logits_loss(y_logit, y_target, weight=weight, reduce='sum')
    jax.block_until_ready(out_sum)
    assert jnp.allclose(out_sum, _ref(y_logit, y_target, weight, 'sum'),
                        atol=1e-4, rtol=1e-5)

    # elementwise ('none')
    out_none = mse_with_logits_loss(y_logit, y_target, reduce='none')
    jax.block_until_ready(out_none)
    assert out_none.shape == (B, C)
    assert jnp.allclose(out_none, _ref(y_logit, y_target, None, 'none'),
                        atol=1e-6, rtol=1e-5)

    # ragged shape: exercises flat-tail padding + last-step masking
    B2, C2 = 7, 33
    yl2 = jax.random.normal(k1, (B2, C2), dtype=jnp.float32)
    yt2 = jax.random.uniform(k2, (B2, C2), dtype=jnp.float32)
    w2 = jax.random.uniform(k3, (B2, C2), dtype=jnp.float32)
    o2 = mse_with_logits_loss(yl2, yt2, weight=w2, reduce='mean')
    jax.block_until_ready(o2)
    assert jnp.allclose(o2, _ref(yl2, yt2, w2, 'mean'), atol=1e-6, rtol=1e-5)
    o2n = mse_with_logits_loss(yl2, yt2, reduce='none')
    jax.block_until_ready(o2n)
    assert o2n.shape == (B2, C2)
    assert jnp.allclose(o2n, _ref(yl2, yt2, None, 'none'), atol=1e-6, rtol=1e-5)

    # multi-step grid with a partial last block (small forced tile) —
    # exercises parallel per-block partials, pl.when last-step masking.
    B3, C3 = 40, 128
    yl3 = jax.random.normal(k1, (B3, C3), dtype=jnp.float32)
    yt3 = jax.random.uniform(k2, (B3, C3), dtype=jnp.float32)
    o3 = mse_with_logits_loss(yl3, yt3, reduce='sum', _tile_rows_override=16)
    jax.block_until_ready(o3)
    assert jnp.allclose(o3, _ref(yl3, yt3, None, 'sum'), atol=1e-3, rtol=1e-5)

    # bf16 inputs stay narrow in HBM; kernel upcasts to f32 internally.
    yl_b, yt_b = y_logit.astype(jnp.bfloat16), y_target.astype(jnp.bfloat16)
    out_bf16 = mse_with_logits_loss(yl_b, yt_b)
    jax.block_until_ready(out_bf16)
    assert jnp.allclose(out_bf16, _ref(yl_b, yt_b), atol=1e-5, rtol=1e-5)

    # bf16 'none' with bf16 output stream (HBM-traffic option).
    out_bf16_none = mse_with_logits_loss(yl_b, yt_b, reduce='none',
                                         out_dtype=jnp.bfloat16)
    jax.block_until_ready(out_bf16_none)
    assert out_bf16_none.dtype == jnp.bfloat16
    assert jnp.allclose(out_bf16_none.astype(jnp.float32),
                        _ref(yl_b, yt_b, None, 'none'), atol=5e-3, rtol=1e-2)

    print("KERNEL_OK")
</pallas_src>

<mosaic_0001>
module attributes {stable_mosaic.version = 11 : i64} {
  func.func @kernel(%arg0: i32, %arg1: memref<8x128xf32, #tpu.memory_space<vmem>>, %arg2: memref<8x128xf32, #tpu.memory_space<vmem>>, %arg3: memref<8x128xf32, #tpu.memory_space<vmem>>) attributes {dimension_semantics = [#tpu.dimension_semantics<parallel>], iteration_bounds = array<i64: 1>, scalar_prefetch = 0 : i64, scratch_operands = 0 : i64, tpu.core_type = #tpu.core_type<tc>, window_params = [{transform_indices = @transform_0, window_bounds = array<i64: 8, 128>}, {transform_indices = @transform_1, window_bounds = array<i64: 8, 128>}, {transform_indices = @transform_2, window_bounds = array<i64: 8, 128>}]} {
    %c0 = arith.constant 0 : index
    %c0_0 = arith.constant 0 : index
    %0 = vector.load %arg1[%c0, %c0_0] : memref<8x128xf32, #tpu.memory_space<vmem>>, vector<8x128xf32>
    %c0_1 = arith.constant 0 : index
    %c0_2 = arith.constant 0 : index
    %1 = vector.load %arg2[%c0_1, %c0_2] : memref<8x128xf32, #tpu.memory_space<vmem>>, vector<8x128xf32>
    %cst = arith.constant 5.000000e-01 : f32
    %2 = vector.broadcast %cst : f32 to vector<8x128xf32>
    %3 = arith.mulf %2, %0 : vector<8x128xf32>
    %4 = math.tanh %3 : vector<8x128xf32>
    %cst_3 = arith.constant 1.000000e+00 : f32
    %5 = vector.broadcast %cst_3 : f32 to vector<8x128xf32>
    %6 = arith.addf %4, %5 : vector<8x128xf32>
    %cst_4 = arith.constant 5.000000e-01 : f32
    %7 = vector.broadcast %cst_4 : f32 to vector<8x128xf32>
    %8 = arith.mulf %7, %6 : vector<8x128xf32>
    %9 = arith.subf %8, %1 : vector<8x128xf32>
    %10 = arith.mulf %9, %9 : vector<8x128xf32>
    %11 = vector.shape_cast %10 : vector<8x128xf32> to vector<1x8x128xf32>
    %cst_5 = arith.constant dense<0.000000e+00> : vector<8x128xf32>
    %12 = vector.multi_reduction <add>, %11, %cst_5 [0] : vector<1x8x128xf32> to vector<8x128xf32>
    %c0_6 = arith.constant 0 : index
    %c0_7 = arith.constant 0 : index
    %13 = vector.load %arg3[%c0_6, %c0_7] : memref<8x128xf32, #tpu.memory_space<vmem>>, vector<8x128xf32>
    tpu.vector_store %arg3[%c0_6, %c0_7], %12 {strides = array<i32>} : memref<8x128xf32, #tpu.memory_space<vmem>>, vector<8x128xf32>,
    return
  }
  func.func @transform_0(%arg0: i32) -> (i32, i32) {
    %c0_i32 = arith.constant 0 : i32
    %c0_i32_0 = arith.constant 0 : i32
    return %arg0, %c0_i32 : i32, i32
  }
  func.func @transform_1(%arg0: i32) -> (i32, i32) {
    %c0_i32 = arith.constant 0 : i32
    %c0_i32_0 = arith.constant 0 : i32
    return %arg0, %c0_i32 : i32, i32
  }
  func.func @transform_2(%arg0: i32) -> (i32, i32) {
    %c0_i32 = arith.constant 0 : i32
    %c0_i32_0 = arith.constant 0 : i32
    return %arg0, %c0_i32 : i32, i32
  }
}

</mosaic_0001>

<llo_original>
// kernel: tpu_custom_call.1
$region0: #{tpu_custom_call.1}
  #allocation0 [shape = 'u32[]', space=smem, size = 0x4, offset = 0x4, fixed_abs, tag = 'smem constant byte address 0x4 - core index']
  #allocation1 [shape = 'u32[144,128]{1,0:T(1,128)}', space=vmem, size = 0x12000, scoped, tag = 'internal scratch']
  %s0 = inlined_call_operand.hbm [shape: f32[8,128], index: 0, kind: input, shape index: {}]
  %s1 = inlined_call_operand.hbm [shape: f32[8,128], index: 1, kind: input, shape index: {}]
  %s2 = inlined_call_operand.hbm [shape: f32[8,128], index: 2, kind: output, shape index: {}]
  %s3 = sld [smem:[#allocation0]]
  $region26: #{tpu_custom_call.1} parent=0
    _
  %s5 = ssub.s32 1, %s3
  %s6 = scalar_select 0, %s5, %s3
  $region1: #{tpu_custom_call.1} parent=0
    #allocation2 [shape = 'u8[4096]{0}', space=vmem, size = 0x1000, scoped, tag = 'input window, operand 0, single buffered']
    #allocation3 [shape = 's32[1]{0}', space=sflag, size = 0x4, scoped, tag = 'scoped memory for tpu_custom_call.1']
    #allocation4 [shape = 's32[1]{0}', space=sflag, size = 0x4, scoped, tag = 'scoped memory for tpu_custom_call.1']
    #allocation5 [shape = 'u8[4096]{0}', space=vmem, size = 0x1000, scoped, tag = 'input window, operand 1, single buffered']
    #allocation6 [shape = 's32[1]{0}', space=sflag, size = 0x4, scoped, tag = 'scoped memory for tpu_custom_call.1']
    #allocation7 [shape = 'u8[4096]{0}', space=vmem, size = 0x1000, scoped, tag = 'output window, operand 0, single buffered']
    %7 = vsyncpa [#allocation3], 0
    %8 = vsyncpa [#allocation6], 0
    %9 = vsyncpa [#allocation4], 0
    // Predicated region
    $region2: #{tpu_custom_call.1} parent=1 // pred_check
      _
    $region3: #{tpu_custom_call.1} parent=1 // pred_check_branch
      %11 = sbr.rel (0) target = $region5
    $region4: #{tpu_custom_call.1} parent=1 // pred_region
      %s13 = ssub.s32 128, 128
      %14 = vsyncadd [#allocation3], %s13
      %s16 = sshll.u32 [#allocation2], 4
      %s17 = int_to_ptr.vmem [resolvable:$true] %s16
      %19 = dma.hbm_to_vmem [thread:$0]  %s0, 128, %s17, [#allocation3]
    $region5: #{tpu_custom_call.1} parent=1 // pred_fallthru
      _
    // Predicated region
    $region6: #{tpu_custom_call.1} parent=1 // pred_check
      _
    $region7: #{tpu_custom_call.1} parent=1 // pred_check_branch
      %21 = sbr.rel (0) target = $region9
    $region8: #{tpu_custom_call.1} parent=1 // pred_region
      %s23 = ssub.s32 128, 128
      %24 = vsyncadd [#allocation6], %s23
      %s26 = sshll.u32 [#allocation5], 4
      %s27 = int_to_ptr.vmem [resolvable:$true] %s26
      %29 = dma.hbm_to_vmem [thread:$0]  %s1, 128, %s27, [#allocation6]
    $region9: #{tpu_custom_call.1} parent=1 // pred_fallthru
      _
    // Predicated region
    $region10: #{tpu_custom_call.1} parent=1 // pred_check
      _
    $region11: #{tpu_custom_call.1} parent=1 // pred_check_branch
      %31 = sbr.rel (0) target = $region13
    $region12: #{tpu_custom_call.1} parent=1 // pred_region
      %32 = dma.done [#allocation3], 128
    $region13: #{tpu_custom_call.1} parent=1 // pred_fallthru
      _
    // Predicated region
    $region14: #{tpu_custom_call.1} parent=1 // pred_check
      _
    $region15: #{tpu_custom_call.1} parent=1 // pred_check_branch
      %34 = sbr.rel (0) target = $region17
    $region16: #{tpu_custom_call.1} parent=1 // pred_region
      %35 = dma.done [#allocation6], 128
    $region17: #{tpu_custom_call.1} parent=1 // pred_fallthru
      _
    %v36 = vld [vmem:[#allocation2] sm:$0xff]
    %v37 = vld [vmem:[#allocation5] sm:$0xff]
    %v38 = vmul.f32 %v36, 0.5
    %v39 = vtanh.pop %v38
    %v40 = vadd.f32 %v39, 1.0
    %v41 = vmul.f32 %v40, 0.5
    %v42 = vsub.f32 %v41, %v37
    %v43 = vmul.f32 %v42, %v42
    %v44 = vadd.f32 %v43, 0.0
    %45 = vst [vmem:[#allocation7] sm:$0xff] %v44
    // Predicated region
    $region18: #{tpu_custom_call.1} parent=1 // pred_check
      _
    $region19: #{tpu_custom_call.1} parent=1 // pred_check_branch
      %47 = sbr.rel (0) target = $region21
    $region20: #{tpu_custom_call.1} parent=1 // pred_region
      %s49 = ssub.s32 128, 128
      %50 = vsyncadd [#allocation4], %s49
      %s52 = sshll.u32 [#allocation7], 4
      %s53 = int_to_ptr.vmem [resolvable:$true] %s52
      %55 = dma.vmem_to_hbm [thread:$0]  %s53, 128, %s2, [#allocation4]
    $region21: #{tpu_custom_call.1} parent=1 // pred_fallthru
      _
    // Predicated region
    $region22: #{tpu_custom_call.1} parent=1 // pred_check
      _
    $region23: #{tpu_custom_call.1} parent=1 // pred_check_branch
      %57 = sbr.rel (0) target = $region25
    $region24: #{tpu_custom_call.1} parent=1 // pred_region
      %58 = dma.done [#allocation4], 128
    $region25: #{tpu_custom_call.1} parent=1 // pred_fallthru
      _
    %59 = vsyncpa [#allocation3], 1
    %60 = vsyncpa [#allocation6], 1
    %61 = vsyncpa [#allocation4], 1

</llo_original>
